<compile_context>
chip_gen: v7x
topology: tpu7x:2x2x1
jax: 0.10.0
libtpu: 0.0.40
codegen_flags: <defaults>
</compile_context>

<pallas_src>
import math

import jax
import jax.numpy as jnp
from jax.experimental import pallas as pl
from jax.experimental.pallas import tpu as pltpu


# -----------------------------------------------------------------------------
# Kernel 1: fused QKV projection.  Grid = (batch, seq_tile).
# -----------------------------------------------------------------------------
def _qkv_proj_kernel(x_ref, wq_ref, wk_ref, wv_ref, bq_ref, bk_ref, bv_ref,
                     q_ref, k_ref, v_ref):
    """x_ref: (1, TS, C) f32.  wq/wk/wv: (C, C) bf16 (pre-transposed for x @ W,
    1/sqrt(C) folded into wq).  bq/bk/bv: (1, C) f32 (bq pre-scaled).
    Outputs q/k/v: (1, TS, C) bf16."""
    x = x_ref[0].astype(jnp.bfloat16)                                 # (TS, C)
    q = jnp.dot(x, wq_ref[...], preferred_element_type=jnp.float32) + bq_ref[...]
    k = jnp.dot(x, wk_ref[...], preferred_element_type=jnp.float32) + bk_ref[...]
    v = jnp.dot(x, wv_ref[...], preferred_element_type=jnp.float32) + bv_ref[...]
    q_ref[0] = q.astype(q_ref.dtype)
    k_ref[0] = k.astype(k_ref.dtype)
    v_ref[0] = v.astype(v_ref.dtype)


# -----------------------------------------------------------------------------
# Kernel 2: flash attention (online softmax) + out-projection + residual.
# Grid = (batch, q_tile, kv_tile); kv_tile is the innermost reduction axis.
# -----------------------------------------------------------------------------
def _flash_attn_kernel(q_ref, k_ref, v_ref, xres_ref, wo_ref, bo_ref, o_ref,
                       m_scr, l_scr, acc_scr):
    """q_ref: (1, TQ, C) bf16 (already scaled).  k_ref/v_ref: (1, TK, C) bf16.
    xres_ref: (1, TQ, C) f32 residual.  wo: (C, C) bf16.  bo: (1, C) f32.
    o_ref: (1, TQ, C) f32.  Scratch: m,l (TQ,1) f32; acc (TQ,C) f32."""
    ki = pl.program_id(2)
    nk = pl.num_programs(2)

    @pl.when(ki == 0)
    def _init():
        m_scr[...] = jnp.full_like(m_scr, -jnp.inf)
        l_scr[...] = jnp.zeros_like(l_scr)
        acc_scr[...] = jnp.zeros_like(acc_scr)

    q = q_ref[0]                                                      # (TQ, C) bf16
    k = k_ref[0]                                                      # (TK, C) bf16
    v = v_ref[0]                                                      # (TK, C) bf16

    # Scores: contract last dim of Q and K (no K transpose copy).
    s = jax.lax.dot_general(q, k, (((1,), (1,)), ((), ())),
                            preferred_element_type=jnp.float32)       # (TQ, TK) f32

    # Online softmax update (f32).
    m_prev = m_scr[...]
    m_new = jnp.maximum(m_prev, jnp.max(s, axis=-1, keepdims=True))
    alpha = jnp.exp(m_prev - m_new)
    p = jnp.exp(s - m_new)                                            # (TQ, TK) f32
    l_scr[...] = alpha * l_scr[...] + jnp.sum(p, axis=-1, keepdims=True)
    acc_scr[...] = alpha * acc_scr[...] + jnp.dot(
        p.astype(jnp.bfloat16), v, preferred_element_type=jnp.float32)
    m_scr[...] = m_new

    # Finalize: normalize, out-projection, bias, residual.
    @pl.when(ki == nk - 1)
    def _final():
        attn = acc_scr[...] * pl.reciprocal(l_scr[...], approx=True)  # (TQ, C) f32
        y = jnp.dot(attn.astype(jnp.bfloat16), wo_ref[...],
                    preferred_element_type=jnp.float32) + bo_ref[...]
        o_ref[0] = (y + xres_ref[0]).astype(o_ref.dtype)


def _pick_tile(size, target):
    """Largest multiple-of-8 divisor of `size` that is <= target (or size)."""
    t = min(target, size)
    if t >= size:
        return size
    t = max(8, (t // 8) * 8)
    while t > 8 and size % t:
        t -= 8
    return t if size % t == 0 else size


def vae_attention_block(x_nchw, w_in, b_in, w_out, b_out, *,
                        tq=512, tk=512, ts=None):
    """Args:
      x_nchw: (N, C, H, W) float32
      w_in  : (3C, C)  PyTorch nn.Linear weight for in_proj
      b_in  : (3C,)    in_proj bias
      w_out : (C, C)   out_proj weight
      b_out : (C,)     out_proj bias
      tq/tk : query / key-value sequence tile sizes (attention kernel)
      ts    : sequence tile for the QKV-projection kernel
    Returns: (N, C, H, W) float32
    """
    n, c, h, w = x_nchw.shape
    s = h * w

    tq = _pick_tile(s, tq)
    tk = _pick_tile(s, tk)
    ts = _pick_tile(s, ts if ts is not None else max(tq, tk))

    # NCHW -> (N, S, C)   (matches x.view(n, c, -1).transpose(-1, -2))
    x_seq = jnp.transpose(x_nchw.reshape(n, c, s), (0, 2, 1)).astype(jnp.float32)

    # Host-side weight prep: split in_proj into Wq/Wk/Wv (lane-aligned, no
    # in-kernel column slicing), transpose for x @ W, fold 1/sqrt(C) into the
    # Q branch, and cast weights to bf16 for the MXU.
    scale = 1.0 / math.sqrt(c)
    w_in = jnp.asarray(w_in, jnp.float32)
    b_in = jnp.asarray(b_in, jnp.float32)
    wq = (w_in[0 * c:1 * c].T * scale).astype(jnp.bfloat16)       # (C, C)
    wk = w_in[1 * c:2 * c].T.astype(jnp.bfloat16)                 # (C, C)
    wv = w_in[2 * c:3 * c].T.astype(jnp.bfloat16)                 # (C, C)
    wo = jnp.asarray(w_out, jnp.float32).T.astype(jnp.bfloat16)   # (C, C)
    bq = (b_in[0 * c:1 * c] * scale)[None, :]                     # (1, C) f32
    bk = b_in[1 * c:2 * c][None, :]
    bv = b_in[2 * c:3 * c][None, :]
    bo = jnp.asarray(b_out, jnp.float32)[None, :]

    f32b, bf16b = 4, 2

    # ---------------- Pass 1: QKV projection --------------------------------
    est1 = (2 * ts * c * f32b            # x tile, double-buffered
            + 2 * 3 * c * c * bf16b      # wq/wk/wv resident (counted 2x)
            + 2 * 3 * c * f32b           # biases
            + 3 * 2 * ts * c * bf16b     # q/k/v output tiles, double-buffered
            + 3 * ts * c * f32b)         # f32 temporaries before the bf16 cast
    vmem1 = int(min(max(2 * est1, 32 << 20), 48 << 20))

    q_all, k_all, v_all = pl.pallas_call(
        _qkv_proj_kernel,
        out_shape=(jax.ShapeDtypeStruct((n, s, c), jnp.bfloat16),
                   jax.ShapeDtypeStruct((n, s, c), jnp.bfloat16),
                   jax.ShapeDtypeStruct((n, s, c), jnp.bfloat16)),
        grid_spec=pltpu.PrefetchScalarGridSpec(
            num_scalar_prefetch=0,
            grid=(n, s // ts),
            in_specs=[
                pl.BlockSpec((1, ts, c), lambda b, i: (b, i, 0)),    # x
                pl.BlockSpec((c, c), lambda b, i: (0, 0)),           # wq
                pl.BlockSpec((c, c), lambda b, i: (0, 0)),           # wk
                pl.BlockSpec((c, c), lambda b, i: (0, 0)),           # wv
                pl.BlockSpec((1, c), lambda b, i: (0, 0)),           # bq
                pl.BlockSpec((1, c), lambda b, i: (0, 0)),           # bk
                pl.BlockSpec((1, c), lambda b, i: (0, 0)),           # bv
            ],
            out_specs=[
                pl.BlockSpec((1, ts, c), lambda b, i: (b, i, 0)),    # q
                pl.BlockSpec((1, ts, c), lambda b, i: (b, i, 0)),    # k
                pl.BlockSpec((1, ts, c), lambda b, i: (b, i, 0)),    # v
            ],
        ),
        compiler_params=pltpu.CompilerParams(
            dimension_semantics=("parallel", "parallel"),
            vmem_limit_bytes=vmem1,
        ),
    )(x_seq, wq, wk, wv, bq, bk, bv)

    # ---------------- Pass 2: flash attention + out-proj + residual ----------
    est2 = (2 * tq * c * bf16b           # q tile, double-buffered
            + 2 * 2 * tk * c * bf16b     # k, v tiles, double-buffered
            + 2 * tq * c * f32b          # residual x tile
            + 2 * tq * c * f32b          # output tile
            + 2 * c * c * bf16b          # wo
            + 2 * c * f32b               # bo
            + tq * c * f32b              # acc scratch
            + 2 * tq * f32b              # m, l scratch
            + 4 * tq * tk * f32b)        # score / p temporaries
    vmem2 = int(min(max(2 * est2, 32 << 20), 48 << 20))

    out_seq = pl.pallas_call(
        _flash_attn_kernel,
        out_shape=jax.ShapeDtypeStruct((n, s, c), jnp.float32),
        grid_spec=pltpu.PrefetchScalarGridSpec(
            num_scalar_prefetch=0,
            grid=(n, s // tq, s // tk),
            in_specs=[
                pl.BlockSpec((1, tq, c), lambda b, qi, ki: (b, qi, 0)),  # Q
                pl.BlockSpec((1, tk, c), lambda b, qi, ki: (b, ki, 0)),  # K
                pl.BlockSpec((1, tk, c), lambda b, qi, ki: (b, ki, 0)),  # V
                pl.BlockSpec((1, tq, c), lambda b, qi, ki: (b, qi, 0)),  # residual x
                pl.BlockSpec((c, c), lambda b, qi, ki: (0, 0)),          # wo
                pl.BlockSpec((1, c), lambda b, qi, ki: (0, 0)),          # bo
            ],
            out_specs=pl.BlockSpec((1, tq, c), lambda b, qi, ki: (b, qi, 0)),
            scratch_shapes=[
                pltpu.VMEM((tq, 1), jnp.float32),    # m (running max)
                pltpu.VMEM((tq, 1), jnp.float32),    # l (running sum)
                pltpu.VMEM((tq, c), jnp.float32),    # acc
            ],
        ),
        compiler_params=pltpu.CompilerParams(
            dimension_semantics=("parallel", "parallel", "arbitrary"),
            vmem_limit_bytes=vmem2,
        ),
    )(q_all, k_all, v_all, x_seq, wo, bo)

    # (N, S, C) -> NCHW
    # TODO(synk): the NCHW<->NSC transposes stay in XLA; a channel-major kernel
    # layout could remove them but needs transposed-operand matmuls in-kernel.
    return jnp.transpose(out_seq, (0, 2, 1)).reshape(n, c, h, w)


def _reference(x_nchw, w_in, b_in, w_out, b_out):
    """Pure-JAX f32 reference of the PyTorch forward (for a sanity check)."""
    n, c, h, w = x_nchw.shape
    s = h * w
    xs = jnp.transpose(x_nchw.reshape(n, c, s), (0, 2, 1))
    qkv = xs @ w_in.T + b_in
    q, k, v = jnp.split(qkv, 3, axis=-1)
    scores = (q @ jnp.swapaxes(k, -1, -2)) / math.sqrt(c)
    p = jax.nn.softmax(scores, axis=-1)
    attn = p @ v
    y = attn @ w_out.T + b_out
    y = y + xs
    return jnp.transpose(y, (0, 2, 1)).reshape(n, c, h, w)


if __name__ == "__main__":
    # Small, deterministic shapes. channels divisible by 32 (respects the
    # GroupNorm(32, channels) declared in __init__ even though forward() never
    # uses it). Spatial 16x16 -> seq len 256; tiles of 64 force a 4x4
    # q/kv-tile grid so the flash/online-softmax path and the two-pass
    # (projection + attention) structure are actually exercised.
    N, C, H, W = 2, 64, 16, 16

    key = jax.random.PRNGKey(0)
    kx, k1, k2, k3, k4 = jax.random.split(key, 5)

    x = jax.random.normal(kx, (N, C, H, W), dtype=jnp.float32)

    # Deterministic parameter init (nn.Linear-style scaled uniform).
    lim_in = 1.0 / math.sqrt(C)
    w_in = jax.random.uniform(k1, (3 * C, C), jnp.float32, -lim_in, lim_in)
    b_in = jax.random.uniform(k2, (3 * C,), jnp.float32, -lim_in, lim_in)
    w_out = jax.random.uniform(k3, (C, C), jnp.float32, -lim_in, lim_in)
    b_out = jax.random.uniform(k4, (C,), jnp.float32, -lim_in, lim_in)

    out = vae_attention_block(x, w_in, b_in, w_out, b_out, tq=64, tk=64, ts=128)
    out = jax.block_until_ready(out)

    ref = _reference(x, w_in, b_in, w_out, b_out)
    assert out.shape == (N, C, H, W)
    # bf16 MXU inputs / intermediates (f32 accumulation) -> relaxed tolerance.
    assert jnp.allclose(out, ref, atol=5e-2, rtol=5e-2), (
        "max abs err = %f" % float(jnp.max(jnp.abs(out - ref))))

    print("KERNEL_OK")
</pallas_src>

<mosaic_0001>
module attributes {stable_mosaic.version = 11 : i64} {
  func.func @_qkv_proj_kernel(%arg0: i32, %arg1: i32, %arg2: memref<1x128x64xf32, #tpu.memory_space<vmem>>, %arg3: memref<64x64xbf16, #tpu.memory_space<vmem>>, %arg4: memref<64x64xbf16, #tpu.memory_space<vmem>>, %arg5: memref<64x64xbf16, #tpu.memory_space<vmem>>, %arg6: memref<1x64xf32, #tpu.memory_space<vmem>>, %arg7: memref<1x64xf32, #tpu.memory_space<vmem>>, %arg8: memref<1x64xf32, #tpu.memory_space<vmem>>, %arg9: memref<1x128x64xbf16, #tpu.memory_space<vmem>>, %arg10: memref<1x128x64xbf16, #tpu.memory_space<vmem>>, %arg11: memref<1x128x64xbf16, #tpu.memory_space<vmem>>) attributes {dimension_semantics = [#tpu.dimension_semantics<parallel>, #tpu.dimension_semantics<parallel>], iteration_bounds = array<i64: 2, 2>, scalar_prefetch = 0 : i64, scratch_operands = 0 : i64, tpu.core_type = #tpu.core_type<tc>, window_params = [{transform_indices = @transform_0, window_bounds = array<i64: 1, 128, 64>}, {pipeline_mode = #tpu.pipeline_mode<synchronous>, transform_indices = @transform_1, window_bounds = array<i64: 64, 64>}, {pipeline_mode = #tpu.pipeline_mode<synchronous>, transform_indices = @transform_2, window_bounds = array<i64: 64, 64>}, {pipeline_mode = #tpu.pipeline_mode<synchronous>, transform_indices = @transform_3, window_bounds = array<i64: 64, 64>}, {pipeline_mode = #tpu.pipeline_mode<synchronous>, transform_indices = @transform_4, window_bounds = array<i64: 1, 64>}, {pipeline_mode = #tpu.pipeline_mode<synchronous>, transform_indices = @transform_5, window_bounds = array<i64: 1, 64>}, {pipeline_mode = #tpu.pipeline_mode<synchronous>, transform_indices = @transform_6, window_bounds = array<i64: 1, 64>}, {transform_indices = @transform_7, window_bounds = array<i64: 1, 128, 64>}, {transform_indices = @transform_8, window_bounds = array<i64: 1, 128, 64>}, {transform_indices = @transform_9, window_bounds = array<i64: 1, 128, 64>}]} {
    %c0 = arith.constant 0 : index
    %c0_0 = arith.constant 0 : index
    %c0_1 = arith.constant 0 : index
    %0 = vector.load %arg2[%c0, %c0_0, %c0_1] : memref<1x128x64xf32, #tpu.memory_space<vmem>>, vector<1x128x64xf32>
    %1 = vector.shape_cast %0 : vector<1x128x64xf32> to vector<128x64xf32>
    %2 = arith.truncf %1 : vector<128x64xf32> to vector<128x64xbf16>
    %c0_2 = arith.constant 0 : index
    %c0_3 = arith.constant 0 : index
    %3 = vector.load %arg3[%c0_2, %c0_3] : memref<64x64xbf16, #tpu.memory_space<vmem>>, vector<64x64xbf16>
    %cst = arith.constant dense<0.000000e+00> : vector<128x64xf32>
    %4 = tpu.matmul %2, %3, %cst {dimension_numbers = #tpu.dot_dimension_numbers<[1], [0], [0], [1], [0, 0, 1, 1], [], []>} : vector<128x64xbf16>, vector<64x64xbf16>, vector<128x64xf32> -> vector<128x64xf32>
    %c0_4 = arith.constant 0 : index
    %c0_5 = arith.constant 0 : index
    %5 = vector.load %arg6[%c0_4, %c0_5] : memref<1x64xf32, #tpu.memory_space<vmem>>, vector<1x64xf32>
    %6 = vector.broadcast %5 : vector<1x64xf32> to vector<128x64xf32>
    %7 = arith.addf %4, %6 : vector<128x64xf32>
    %c0_6 = arith.constant 0 : index
    %c0_7 = arith.constant 0 : index
    %8 = vector.load %arg4[%c0_6, %c0_7] : memref<64x64xbf16, #tpu.memory_space<vmem>>, vector<64x64xbf16>
    %cst_8 = arith.constant dense<0.000000e+00> : vector<128x64xf32>
    %9 = tpu.matmul %2, %8, %cst_8 {dimension_numbers = #tpu.dot_dimension_numbers<[1], [0], [0], [1], [0, 0, 1, 1], [], []>} : vector<128x64xbf16>, vector<64x64xbf16>, vector<128x64xf32> -> vector<128x64xf32>
    %c0_9 = arith.constant 0 : index
    %c0_10 = arith.constant 0 : index
    %10 = vector.load %arg7[%c0_9, %c0_10] : memref<1x64xf32, #tpu.memory_space<vmem>>, vector<1x64xf32>
    %11 = vector.broadcast %10 : vector<1x64xf32> to vector<128x64xf32>
    %12 = arith.addf %9, %11 : vector<128x64xf32>
    %c0_11 = arith.constant 0 : index
    %c0_12 = arith.constant 0 : index
    %13 = vector.load %arg5[%c0_11, %c0_12] : memref<64x64xbf16, #tpu.memory_space<vmem>>, vector<64x64xbf16>
    %cst_13 = arith.constant dense<0.000000e+00> : vector<128x64xf32>
    %14 = tpu.matmul %2, %13, %cst_13 {dimension_numbers = #tpu.dot_dimension_numbers<[1], [0], [0], [1], [0, 0, 1, 1], [], []>} : vector<128x64xbf16>, vector<64x64xbf16>, vector<128x64xf32> -> vector<128x64xf32>
    %c0_14 = arith.constant 0 : index
    %c0_15 = arith.constant 0 : index
    %15 = vector.load %arg8[%c0_14, %c0_15] : memref<1x64xf32, #tpu.memory_space<vmem>>, vector<1x64xf32>
    %16 = vector.broadcast %15 : vector<1x64xf32> to vector<128x64xf32>
    %17 = arith.addf %14, %16 : vector<128x64xf32>
    %18 = arith.truncf %7 : vector<128x64xf32> to vector<128x64xbf16>
    %c0_16 = arith.constant 0 : index
    %c0_17 = arith.constant 0 : index
    %c0_18 = arith.constant 0 : index
    %19 = vector.load %arg9[%c0_16, %c0_17, %c0_18] : memref<1x128x64xbf16, #tpu.memory_space<vmem>>, vector<1x128x64xbf16>
    %20 = vector.shape_cast %19 : vector<1x128x64xbf16> to vector<128x64xbf16>
    %21 = vector.shape_cast %18 : vector<128x64xbf16> to vector<1x128x64xbf16>
    tpu.vector_store %arg9[%c0_16, %c0_17, %c0_18], %21 {strides = array<i32>} : memref<1x128x64xbf16, #tpu.memory_space<vmem>>, vector<1x128x64xbf16>,
    %22 = arith.truncf %12 : vector<128x64xf32> to vector<128x64xbf16>
    %c0_19 = arith.constant 0 : index
    %c0_20 = arith.constant 0 : index
    %c0_21 = arith.constant 0 : index
    %23 = vector.load %arg10[%c0_19, %c0_20, %c0_21] : memref<1x128x64xbf16, #tpu.memory_space<vmem>>, vector<1x128x64xbf16>
    %24 = vector.shape_cast %23 : vector<1x128x64xbf16> to vector<128x64xbf16>
    %25 = vector.shape_cast %22 : vector<128x64xbf16> to vector<1x128x64xbf16>
    tpu.vector_store %arg10[%c0_19, %c0_20, %c0_21], %25 {strides = array<i32>} : memref<1x128x64xbf16, #tpu.memory_space<vmem>>, vector<1x128x64xbf16>,
    %26 = arith.truncf %17 : vector<128x64xf32> to vector<128x64xbf16>
    %c0_22 = arith.constant 0 : index
    %c0_23 = arith.constant 0 : index
    %c0_24 = arith.constant 0 : index
    %27 = vector.load %arg11[%c0_22, %c0_23, %c0_24] : memref<1x128x64xbf16, #tpu.memory_space<vmem>>, vector<1x128x64xbf16>
    %28 = vector.shape_cast %27 : vector<1x128x64xbf16> to vector<128x64xbf16>
    %29 = vector.shape_cast %26 : vector<128x64xbf16> to vector<1x128x64xbf16>
    tpu.vector_store %arg11[%c0_22, %c0_23, %c0_24], %29 {strides = array<i32>} : memref<1x128x64xbf16, #tpu.memory_space<vmem>>, vector<1x128x64xbf16>,
    return
  }
  func.func @transform_0(%arg0: i32, %arg1: i32) -> (i32, i32, i32) {
    %c0_i32 = arith.constant 0 : i32
    %c0_i32_0 = arith.constant 0 : i32
    return %arg0, %arg1, %c0_i32 : i32, i32, i32
  }
  func.func @transform_1(%arg0: i32, %arg1: i32) -> (i32, i32) {
    %c0_i32 = arith.constant 0 : i32
    %c0_i32_0 = arith.constant 0 : i32
    %c0_i32_1 = arith.constant 0 : i32
    return %c0_i32, %c0_i32_0 : i32, i32
  }
  func.func @transform_2(%arg0: i32, %arg1: i32) -> (i32, i32) {
    %c0_i32 = arith.constant 0 : i32
    %c0_i32_0 = arith.constant 0 : i32
    %c0_i32_1 = arith.constant 0 : i32
    return %c0_i32, %c0_i32_0 : i32, i32
  }
  func.func @transform_3(%arg0: i32, %arg1: i32) -> (i32, i32) {
    %c0_i32 = arith.constant 0 : i32
    %c0_i32_0 = arith.constant 0 : i32
    %c0_i32_1 = arith.constant 0 : i32
    return %c0_i32, %c0_i32_0 : i32, i32
  }
  func.func @transform_4(%arg0: i32, %arg1: i32) -> (i32, i32) {
    %c0_i32 = arith.constant 0 : i32
    %c0_i32_0 = arith.constant 0 : i32
    %c0_i32_1 = arith.constant 0 : i32
    return %c0_i32, %c0_i32_0 : i32, i32
  }
  func.func @transform_5(%arg0: i32, %arg1: i32) -> (i32, i32) {
    %c0_i32 = arith.constant 0 : i32
    %c0_i32_0 = arith.constant 0 : i32
    %c0_i32_1 = arith.constant 0 : i32
    return %c0_i32, %c0_i32_0 : i32, i32
  }
  func.func @transform_6(%arg0: i32, %arg1: i32) -> (i32, i32) {
    %c0_i32 = arith.constant 0 : i32
    %c0_i32_0 = arith.constant 0 : i32
    %c0_i32_1 = arith.constant 0 : i32
    return %c0_i32, %c0_i32_0 : i32, i32
  }
  func.func @transform_7(%arg0: i32, %arg1: i32) -> (i32, i32, i32) {
    %c0_i32 = arith.constant 0 : i32
    %c0_i32_0 = arith.constant 0 : i32
    return %arg0, %arg1, %c0_i32 : i32, i32, i32
  }
  func.func @transform_8(%arg0: i32, %arg1: i32) -> (i32, i32, i32) {
    %c0_i32 = arith.constant 0 : i32
    %c0_i32_0 = arith.constant 0 : i32
    return %arg0, %arg1, %c0_i32 : i32, i32, i32
  }
  func.func @transform_9(%arg0: i32, %arg1: i32) -> (i32, i32, i32) {
    %c0_i32 = arith.constant 0 : i32
    %c0_i32_0 = arith.constant 0 : i32
    return %arg0, %arg1, %c0_i32 : i32, i32, i32
  }
}

</mosaic_0001>

<llo_original>
// kernel: tpu_custom_call.1
$region0: #{tpu_custom_call.1}
  #allocation0 [shape = 'u32[]', space=smem, size = 0x4, offset = 0x4, fixed_abs, tag = 'smem constant byte address 0x4 - core index']
  #allocation1 [shape = 'u32[144,128]{1,0:T(1,128)}', space=vmem, size = 0x12000, scoped, tag = 'internal scratch']
  %s0 = inlined_call_operand.vmem [shape: f32[2,256,64], index: 0, kind: input, shape index: {}]
  %s1 = inlined_call_operand.vmem [shape: bf16[64,64], index: 1, kind: input, shape index: {}]
  %s2 = inlined_call_operand.vmem [shape: bf16[64,64], index: 2, kind: input, shape index: {}]
  %s3 = inlined_call_operand.vmem [shape: bf16[64,64], index: 3, kind: input, shape index: {}]
  %s4 = inlined_call_operand.vmem [shape: f32[1,64], index: 4, kind: input, shape index: {}]
  %s5 = inlined_call_operand.vmem [shape: f32[1,64], index: 5, kind: input, shape index: {}]
  %s6 = inlined_call_operand.vmem [shape: f32[1,64], index: 6, kind: input, shape index: {}]
  %s7 = inlined_call_operand.vmem [shape: bf16[2,256,64], index: 7, kind: output, shape index: {0}]
  %s8 = inlined_call_operand.vmem [shape: bf16[2,256,64], index: 8, kind: output, shape index: {1}]
  %s9 = inlined_call_operand.vmem [shape: bf16[2,256,64], index: 9, kind: output, shape index: {2}]
  %10 = xla_tuple %s7, %s8, %s9
  %s11 = sld [smem:[#allocation0]]
  $region77: #{tpu_custom_call.1} parent=0
    _
  %s13 = ssub.s32 1, %s11
  %s14 = scalar_select 0, %s13, %s11
  loop: start=0, step=1, limit=6
  $region2: #{tpu_custom_call.1} parent=0 // loop_pre_header
    _
  $region3: #{tpu_custom_call.1} parent=0 // loop_header
    %s16 = sphi 0, %s20
    %p17 = scmp.ge.s32.totalorder %s16, 6
    %s23 = sphi 0, %s35
    %s24 = sphi 0, %s31
    %s25 = sphi 0, %s23
    %s26 = sphi 0, %s24
    %s27 = sphi 0, %s25
    %s28 = sphi 0, %s26
    %s40 = sphi 0, %s42
    %s43 = sphi 0, %s40
    %s44 = sphi 0, %s43
    %s60 = sphi 0, %s44
    %s64 = sphi 0, %s64
    %s66 = sphi 0, %s64
    %s67 = sphi 0, %s66
    %s81 = sphi 0, %s67
    %s85 = sphi 0, %s85
    %s87 = sphi 0, %s85
    %s88 = sphi 0, %s87
    %s102 = sphi 0, %s88
    %s106 = sphi 0, %s106
    %s108 = sphi 0, %s106
    %s109 = sphi 0, %s108
    %s123 = sphi 0, %s109
    %s127 = sphi 0, %s127
    %s129 = sphi 0, %s127
    %s130 = sphi 0, %s129
    %s144 = sphi 0, %s130
    %s148 = sphi 0, %s148
    %s150 = sphi 0, %s148
    %s151 = sphi 0, %s150
    %s165 = sphi 0, %s151
    %s169 = sphi 0, %s169
    %s171 = sphi 0, %s169
    %s172 = sphi 0, %s171
    %s186 = sphi 0, %s172
    %s194 = sphi 0, %s196
    %s197 = sphi 0, %s194
    %s198 = sphi 0, %s197
    %s214 = sphi 0, %s198
    %s222 = sphi 0, %s224
    %s225 = sphi 0, %s222
    %s226 = sphi 0, %s225
    %s242 = sphi 0, %s226
    %s250 = sphi 0, %s252
    %s253 = sphi 0, %s250
    %s254 = sphi 0, %s253
    %s270 = sphi 0, %s254
  $region4: #{tpu_custom_call.1} parent=0 // loop_header_branch
    %19 = sbr.rel (%p17) target = $region8
  $region5: #{tpu_custom_call.1} parent=0 // loop_body
    %s21 = ssub.s32 %s16, 1
    %s22 = ssub.s32 %s16, 2
    %s29 = sadd.s32 1, %s24
    %p30 = scmp.ge.s32.totalorder %s29, 2
    %s31 = scalar_select %p30, 0, %s29
    %s32 = sadd.s32 1, %s23
    %s33 = scalar_select %p30, %s32, %s23
    %p34 = scmp.ge.s32.totalorder %s33, 2
    %s35 = scalar_select %p34, 0, %s33
    %s36 = ssub.s32 %s23, %s35
    %s37 = ssub.s32 %s24, %s31
    %s38 = sor.u32 %s36, %s37
    %p39 = scmp.eq.s32.totalorder %s38, 0
    %s41 = sadd.s32 %s40, 1
    %s42 = scalar_select %p39, %s40, %s41
    %p45 = pneg %p39
    %p46 = scmp.eq.s32.totalorder %s16, 3
    %p47 = por %p45, %p46
    %p48 = scmp.ne.s32.totalorder %s40, %s43
    %p49 = scmp.eq.s32.totalorder %s16, 0
    %p50 = por %p48, %p49
    %p51 = scmp.ne.s32.totalorder %s40, %s43
    %p52 = scmp.eq.s32.totalorder %s21, 3
    %p53 = por %p51, %p52
    %p54 = scmp.ne.s32.totalorder %s43, %s44
    %p55 = scmp.eq.s32.totalorder %s21, 0
    %p56 = por %p54, %p55
    %p57 = scmp.ne.s32.totalorder %s43, %s44
    %p58 = scmp.eq.s32.totalorder %s22, 3
    %p59 = por %p57, %p58
    %p61 = scmp.ne.s32.totalorder %s44, %s60
    %p62 = scmp.eq.s32.totalorder %s22, 0
    %p63 = por %p61, %p62
    %s65 = sadd.s32 %s64, 1
    %p68 = scmp.eq.s32.totalorder %s16, 3
    %p69 = scmp.ne.s32.totalorder %s64, %s66
    %p70 = scmp.eq.s32.totalorder %s16, 0
    %p71 = por %p69, %p70
    %p72 = scmp.ne.s32.totalorder %s64, %s66
    %p73 = scmp.eq.s32.totalorder %s21, 3
    %p74 = por %p72, %p73
    %p75 = scmp.ne.s32.totalorder %s66, %s67
    %p76 = scmp.eq.s32.totalorder %s21, 0
    %p77 = por %p75, %p76
    %p78 = scmp.ne.s32.totalorder %s66, %s67
    %p79 = scmp.eq.s32.totalorder %s22, 3
    %p80 = por %p78, %p79
    %p82 = scmp.ne.s32.totalorder %s67, %s81
    %p83 = scmp.eq.s32.totalorder %s22, 0
    %p84 = por %p82, %p83
    %s86 = sadd.s32 %s85, 1
    %p89 = scmp.eq.s32.totalorder %s16, 3
    %p90 = scmp.ne.s32.totalorder %s85, %s87
    %p91 = scmp.eq.s32.totalorder %s16, 0
    %p92 = por %p90, %p91
    %p93 = scmp.ne.s32.totalorder %s85, %s87
    %p94 = scmp.eq.s32.totalorder %s21, 3
    %p95 = por %p93, %p94
    %p96 = scmp.ne.s32.totalorder %s87, %s88
    %p97 = scmp.eq.s32.totalorder %s21, 0
    %p98 = por %p96, %p97
    %p99 = scmp.ne.s32.totalorder %s87, %s88
    %p100 = scmp.eq.s32.totalorder %s22, 3
    %p101 = por %p99, %p100
    %p103 = scmp.ne.s32.totalorder %s88, %s102
    %p104 = scmp.eq.s32.totalorder %s22, 0
    %p105 = por %p103, %p104
    %s107 = sadd.s32 %s106, 1
    %p110 = scmp.eq.s32.totalorder %s16, 3
    %p111 = scmp.ne.s32.totalorder %s106, %s108
    %p112 = scmp.eq.s32.totalorder %s16, 0
    %p113 = por %p111, %p112
    %p114 = scmp.ne.s32.totalorder %s106, %s108
    %p115 = scmp.eq.s32.totalorder %s21, 3
    %p116 = por %p114, %p115
    %p117 = scmp.ne.s32.totalorder %s108, %s109
    %p118 = scmp.eq.s32.totalorder %s21, 0
    %p119 = por %p117, %p118
    %p120 = scmp.ne.s32.totalorder %s108, %s109
    %p121 = scmp.eq.s32.totalorder %s22, 3
    %p122 = por %p120, %p121
    %p124 = scmp.ne.s32.totalorder %s109, %s123
    %p125 = scmp.eq.s32.totalorder %s22, 0
    %p126 = por %p124, %p125
    %s128 = sadd.s32 %s127, 1
    %p131 = scmp.eq.s32.totalorder %s16, 3
    %p132 = scmp.ne.s32.totalorder %s127, %s129
    %p133 = scmp.eq.s32.totalorder %s16, 0
    %p134 = por %p132, %p133
    %p135 = scmp.ne.s32.totalorder %s127, %s129
    %p136 = scmp.eq.s32.totalorder %s21, 3
    %p137 = por %p135, %p136
    %p138 = scmp.ne.s32.totalorder %s129, %s130
    %p139 = scmp.eq.s32.totalorder %s21, 0
    %p140 = por %p138, %p139
    %p141 = scmp.ne.s32.totalorder %s129, %s130
    %p142 = scmp.eq.s32.totalorder %s22, 3
    %p143 = por %p141, %p142
    %p145 = scmp.ne.s32.totalorder %s130, %s144
    %p146 = scmp.eq.s32.totalorder %s22, 0
    %p147 = por %p145, %p146
    %s149 = sadd.s32 %s148, 1
    %p152 = scmp.eq.s32.totalorder %s16, 3
    %p153 = scmp.ne.s32.totalorder %s148, %s150
    %p154 = scmp.eq.s32.totalorder %s16, 0
    %p155 = por %p153, %p154
    %p156 = scmp.ne.s32.totalorder %s148, %s150
    %p157 = scmp.eq.s32.totalorder %s21, 3
    %p158 = por %p156, %p157
    %p159 = scmp.ne.s32.totalorder %s150, %s151
    %p160 = scmp.eq.s32.totalorder %s21, 0
    %p161 = por %p159, %p160
    %p162 = scmp.ne.s32.totalorder %s150, %s151
    %p163 = scmp.eq.s32.totalorder %s22, 3
    %p164 = por %p162, %p163
    %p166 = scmp.ne.s32.totalorder %s151, %s165
    %p167 = scmp.eq.s32.totalorder %s22, 0
    %p168 = por %p166, %p167
    %s170 = sadd.s32 %s169, 1
    %p173 = scmp.eq.s32.totalorder %s16, 3
    %p174 = scmp.ne.s32.totalorder %s169, %s171
    %p175 = scmp.eq.s32.totalorder %s16, 0
    %p176 = por %p174, %p175
    %p177 = scmp.ne.s32.totalorder %s169, %s171
    %p178 = scmp.eq.s32.totalorder %s21, 3
    %p179 = por %p177, %p178
    %p180 = scmp.ne.s32.totalorder %s171, %s172
    %p181 = scmp.eq.s32.totalorder %s21, 0
    %p182 = por %p180, %p181
    %p183 = scmp.ne.s32.totalorder %s171, %s172
    %p184 = scmp.eq.s32.totalorder %s22, 3
    %p185 = por %p183, %p184
    %p187 = scmp.ne.s32.totalorder %s172, %s186
    %p188 = scmp.eq.s32.totalorder %s22, 0
    %p189 = por %p187, %p188
    %s190 = ssub.s32 %s23, %s35
    %s191 = ssub.s32 %s24, %s31
    %s192 = sor.u32 %s190, %s191
    %p193 = scmp.eq.s32.totalorder %s192, 0
    %s195 = sadd.s32 %s194, 1
    %s196 = scalar_select %p193, %s194, %s195
    %p199 = pneg %p193
    %p200 = scmp.eq.s32.totalorder %s16, 3
    %p201 = por %p199, %p200
    %p202 = scmp.ne.s32.totalorder %s194, %s197
    %p203 = scmp.eq.s32.totalorder %s16, 0
    %p204 = por %p202, %p203
    %p205 = scmp.ne.s32.totalorder %s194, %s197
    %p206 = scmp.eq.s32.totalorder %s21, 3
    %p207 = por %p205, %p206
    %p208 = scmp.ne.s32.totalorder %s197, %s198
    %p209 = scmp.eq.s32.totalorder %s21, 0
    %p210 = por %p208, %p209
    %p211 = scmp.ne.s32.totalorder %s197, %s198
    %p212 = scmp.eq.s32.totalorder %s22, 3
    %p213 = por %p211, %p212
    %p215 = scmp.ne.s32.totalorder %s198, %s214
    %p216 = scmp.eq.s32.totalorder %s22, 0
    %p217 = por %p215, %p216
    %s218 = ssub.s32 %s23, %s35
    %s219 = ssub.s32 %s24, %s31
    %s220 = sor.u32 %s218, %s219
    %p221 = scmp.eq.s32.totalorder %s220, 0
    %s223 = sadd.s32 %s222, 1
    %s224 = scalar_select %p221, %s222, %s223
    %p227 = pneg %p221
    %p228 = scmp.eq.s32.totalorder %s16, 3
    %p229 = por %p227, %p228
    %p230 = scmp.ne.s32.totalorder %s222, %s225
    %p231 = scmp.eq.s32.totalorder %s16, 0
    %p232 = por %p230, %p231
    %p233 = scmp.ne.s32.totalorder %s222, %s225
    %p234 = scmp.eq.s32.totalorder %s21, 3
    %p235 = por %p233, %p234
    %p236 = scmp.ne.s32.totalorder %s225, %s226
    %p237 = scmp.eq.s32.totalorder %s21, 0
    %p238 = por %p236, %p237
    %p239 = scmp.ne.s32.totalorder %s225, %s226
    %p240 = scmp.eq.s32.totalorder %s22, 3
    %p241 = por %p239, %p240
    %p243 = scmp.ne.s32.totalorder %s226, %s242
    %p244 = scmp.eq.s32.totalorder %s22, 0
    %p245 = por %p243, %p244
    %s246 = ssub.s32 %s23, %s35
    %s247 = ssub.s32 %s24, %s31
    %s248 = sor.u32 %s246, %s247
    %p249 = scmp.eq.s32.totalorder %s248, 0
    %s251 = sadd.s32 %s250, 1
    %s252 = scalar_select %p249, %s250, %s251
    %p255 = pneg %p249
    %p256 = scmp.eq.s32.totalorder %s16, 3
    %p257 = por %p255, %p256
    %p258 = scmp.ne.s32.totalorder %s250, %s253
    %p259 = scmp.eq.s32.totalorder %s16, 0
    %p260 = por %p258, %p259
    %p261 = scmp.ne.s32.totalorder %s250, %s253
    %p262 = scmp.eq.s32.totalorder %s21, 3
    %p263 = por %p261, %p262
    %p264 = scmp.ne.s32.totalorder %s253, %s254
    %p265 = scmp.eq.s32.totalorder %s21, 0
    %p266 = por %p264, %p265
    %p267 = scmp.ne.s32.totalorder %s253, %s254
    %p268 = scmp.eq.s32.totalorder %s22, 3
    %p269 = por %p267, %p268
    %p271 = scmp.ne.s32.totalorder %s254, %s270
    %p272 = scmp.eq.s32.totalorder %s22, 0
    %p273 = por %p271, %p272
    %p274 = scmp.le.s32.totalorder 1, %s16
    %p275 = scmp.lt.s32.totalorder %s16, 5
    %p276 = pnand %p274, %p275
    %p277 = pneg %p276
    // Predicated region
    $region9: #{tpu_custom_call.1} parent=5 // pred_check
      _
    $region10: #{tpu_custom_call.1} parent=5 // pred_check_branch
      %279 = sbr.rel (%p276) target = $region12
    $region11: #{tpu_custom_call.1} parent=5 // pred_region
      %s280 = ssub.s32 %s16, 1
      // Predicated region
      $region13: #{tpu_custom_call.1} parent=11 // pred_check
        %p281 = pneg %p77
      $region14: #{tpu_custom_call.1} parent=11 // pred_check_branch
        %283 = sbr.rel (%p281) target = $region16
      $region15: #{tpu_custom_call.1} parent=11 // pred_region
        _
      $region16: #{tpu_custom_call.1} parent=11 // pred_fallthru
        _
      // Predicated region
      $region17: #{tpu_custom_call.1} parent=11 // pred_check
        %p284 = pneg %p98
      $region18: #{tpu_custom_call.1} parent=11 // pred_check_branch
        %286 = sbr.rel (%p284) target = $region20
      $region19: #{tpu_custom_call.1} parent=11 // pred_region
        _
      $region20: #{tpu_custom_call.1} parent=11 // pred_fallthru
        _
      // Predicated region
      $region21: #{tpu_custom_call.1} parent=11 // pred_check
        %p287 = pneg %p119
      $region22: #{tpu_custom_call.1} parent=11 // pred_check_branch
        %289 = sbr.rel (%p287) target = $region24
      $region23: #{tpu_custom_call.1} parent=11 // pred_region
        _
      $region24: #{tpu_custom_call.1} parent=11 // pred_fallthru
        _
      // Predicated region
      $region25: #{tpu_custom_call.1} parent=11 // pred_check
        %p290 = pneg %p140
      $region26: #{tpu_custom_call.1} parent=11 // pred_check_branch
        %292 = sbr.rel (%p290) target = $region28
      $region27: #{tpu_custom_call.1} parent=11 // pred_region
        _
      $region28: #{tpu_custom_call.1} parent=11 // pred_fallthru
        _
      // Predicated region
      $region29: #{tpu_custom_call.1} parent=11 // pred_check
        %p293 = pneg %p161
      $region30: #{tpu_custom_call.1} parent=11 // pred_check_branch
        %295 = sbr.rel (%p293) target = $region32
      $region31: #{tpu_custom_call.1} parent=11 // pred_region
        _
      $region32: #{tpu_custom_call.1} parent=11 // pred_fallthru
        _
      // Predicated region
      $region33: #{tpu_custom_call.1} parent=11 // pred_check
        %p296 = pneg %p182
      $region34: #{tpu_custom_call.1} parent=11 // pred_check_branch
        %298 = sbr.rel (%p296) target = $region36
      $region35: #{tpu_custom_call.1} parent=11 // pred_region
        _
      $region36: #{tpu_custom_call.1} parent=11 // pred_fallthru
        _
    $region12: #{tpu_custom_call.1} parent=5 // pred_fallthru
      _
    %p299 = scmp.lt.s32.totalorder %s16, 4
    // Predicated region
    $region37: #{tpu_custom_call.1} parent=5 // pred_check
      %p300 = pneg %p299
    $region38: #{tpu_custom_call.1} parent=5 // pred_check_branch
      %302 = sbr.rel (%p300) target = $region40
    $region39: #{tpu_custom_call.1} parent=5 // pred_region
      // Predicated region
      $region41: #{tpu_custom_call.1} parent=39 // pred_check
        %p303 = pneg %p50
      $region42: #{tpu_custom_call.1} parent=39 // pred_check_branch
        %305 = sbr.rel (%p303) target = $region44
      $region43: #{tpu_custom_call.1} parent=39 // pred_region
        %s306 = smul.u32 16, %s24
        %p307 = scmp.lt.s32.totalorder %s23, 1
        %s308 = scalar_select %p307, %s23, 1
        %p309 = scmp.lt.s32.totalorder %s306, 31
        %s310 = scalar_select %p309, %s306, 31
        %s311 = smul.addr %s308, 32
        %s312 = sadd.s32 %s310, %s311
        %s313 = smul.addr %s312, 8
        %s314 = scalar_lea.vmem %s0, %s313
        %s315 = smul.u32 16, %s24
      $region44: #{tpu_custom_call.1} parent=39 // pred_fallthru
        _
    $region40: #{tpu_custom_call.1} parent=5 // pred_fallthru
      _
    %p316 = scmp.le.s32.totalorder 1, %s16
    %p317 = scmp.lt.s32.totalorder %s16, 5
    %p318 = pnand %p316, %p317
    %p319 = pneg %p318
    // Predicated region
    $region45: #{tpu_custom_call.1} parent=5 // pred_check
      _
    $region46: #{tpu_custom_call.1} parent=5 // pred_check_branch
      %321 = sbr.rel (%p318) target = $region48
    $region47: #{tpu_custom_call.1} parent=5 // pred_region
      %s322 = ssub.s32 %s16, 1
      %s323 = smul.u32 16, %s26
      %p324 = scmp.lt.s32.totalorder %s25, 1
      %s325 = scalar_select %p324, %s25, 1
      %p326 = scmp.lt.s32.totalorder %s323, 31
      %s327 = scalar_select %p326, %s323, 31
      %s328 = smul.addr %s325, 32
      %s329 = sadd.s32 %s327, %s328
      %s330 = smul.addr %s329, 8
      %s331 = scalar_lea.vmem %s0, %s330
      %p332 = pneg %p56
      %p333 = pneg %p53
      %p334 = pneg %p77
      %p335 = pneg %p74
      %p336 = pneg %p98
      %p337 = pneg %p95
      %p338 = pneg %p119
      %p339 = pneg %p116
      %p340 = pneg %p140
      %p341 = pneg %p137
      %p342 = pneg %p161
      %p343 = pneg %p158
      %p344 = pneg %p182
      %p345 = pneg %p179
      %p346 = pneg %p210
      %p347 = pneg %p207
      %s348 = smul.u32 16, %s26
      %p349 = scmp.lt.s32.totalorder %s25, 1
      %s350 = scalar_select %p349, %s25, 1
      %p351 = scmp.lt.s32.totalorder %s348, 31
      %s352 = scalar_select %p351, %s348, 31
      %s353 = smul.addr %s350, 32
      %s354 = sadd.s32 %s352, %s353
      %s355 = smul.addr %s354, 4
      %s356 = scalar_lea.vmem %s7, %s355
      %p357 = pneg %p238
      %p358 = pneg %p235
      %s359 = smul.u32 16, %s26
      %p360 = scmp.lt.s32.totalorder %s25, 1
      %s361 = scalar_select %p360, %s25, 1
      %p362 = scmp.lt.s32.totalorder %s359, 31
      %s363 = scalar_select %p362, %s359, 31
      %s364 = smul.addr %s361, 32
      %s365 = sadd.s32 %s363, %s364
      %s366 = smul.addr %s365, 4
      %s367 = scalar_lea.vmem %s8, %s366
      %p368 = pneg %p266
      %p369 = pneg %p263
      %s370 = smul.u32 16, %s26
      %p371 = scmp.lt.s32.totalorder %s25, 1
      %s372 = scalar_select %p371, %s25, 1
      %p373 = scmp.lt.s32.totalorder %s370, 31
      %s374 = scalar_select %p373, %s370, 31
      %s375 = smul.addr %s372, 32
      %s376 = sadd.s32 %s374, %s375
      %s377 = smul.addr %s376, 4
      %s378 = scalar_lea.vmem %s9, %s377
      %s379 = smul.u32 16, %s26
      %p380 = scmp.lt.s32.totalorder %s25, 1
      %s381 = scalar_select %p380, %s25, 1
      %p382 = scmp.lt.s32.totalorder %s379, 31
      %s383 = scalar_select %p382, %s379, 31
      %s384 = smul.addr %s381, 32
      %s385 = sadd.s32 %s383, %s384
      %s386 = smul.addr %s385, 8
      %s387 = scalar_lea.vmem %s0, %s386
      %s388 = smul.u32 16, %s26
      %s389 = smul.u32 16, %s26
      %p390 = scmp.lt.s32.totalorder %s25, 1
      %s391 = scalar_select %p390, %s25, 1
      %p392 = scmp.lt.s32.totalorder %s389, 31
      %s393 = scalar_select %p392, %s389, 31
      %s394 = smul.addr %s391, 32
      %s395 = sadd.s32 %s393, %s394
      %s396 = smul.addr %s395, 4
      %s397 = scalar_lea.vmem %s7, %s396
      %s398 = smul.u32 16, %s26
      %s399 = smul.u32 16, %s26
      %p400 = scmp.lt.s32.totalorder %s25, 1
      %s401 = scalar_select %p400, %s25, 1
      %p402 = scmp.lt.s32.totalorder %s399, 31
      %s403 = scalar_select %p402, %s399, 31
      %s404 = smul.addr %s401, 32
      %s405 = sadd.s32 %s403, %s404
      %s406 = smul.addr %s405, 4
      %s407 = scalar_lea.vmem %s8, %s406
      %s408 = smul.u32 16, %s26
      %s409 = smul.u32 16, %s26
      %p410 = scmp.lt.s32.totalorder %s25, 1
      %s411 = scalar_select %p410, %s25, 1
      %p412 = scmp.lt.s32.totalorder %s409, 31
      %s413 = scalar_select %p412, %s409, 31
      %s414 = smul.addr %s411, 32
      %s415 = sadd.s32 %s413, %s414
      %s416 = smul.addr %s415, 4
      %s417 = scalar_lea.vmem %s9, %s416
      %s418 = smul.u32 16, %s26
      %v420 = vld [vmem:[%s387] sm:$0xff]
      %v421 = vld [vmem:[%s387 + $0x8] sm:$0xff]
      %v422 = vld [vmem:[%s387 + $0x10] sm:$0xff]
      %v423 = vld [vmem:[%s387 + $0x18] sm:$0xff]
      %v424 = vld [vmem:[%s387 + $0x20] sm:$0xff]
      %v425 = vld [vmem:[%s387 + $0x28] sm:$0xff]
      %v426 = vld [vmem:[%s387 + $0x30] sm:$0xff]
      %v427 = vld [vmem:[%s387 + $0x38] sm:$0xff]
      %v428 = vld [vmem:[%s387 + $0x40] sm:$0xff]
      %v429 = vld [vmem:[%s387 + $0x48] sm:$0xff]
      %v430 = vld [vmem:[%s387 + $0x50] sm:$0xff]
      %v431 = vld [vmem:[%s387 + $0x58] sm:$0xff]
      %v432 = vld [vmem:[%s387 + $0x60] sm:$0xff]
      %v433 = vld [vmem:[%s387 + $0x68] sm:$0xff]
      %v434 = vld [vmem:[%s387 + $0x70] sm:$0xff]
      %v435 = vld [vmem:[%s387 + $0x78] sm:$0xff]
      %v436 = vpack.c.bf16 %v421, %v420
      %v437 = vpack.c.bf16 %v423, %v422
      %v438 = vpack.c.bf16 %v425, %v424
      %v439 = vpack.c.bf16 %v427, %v426
      %v440 = vpack.c.bf16 %v429, %v428
      %v441 = vpack.c.bf16 %v431, %v430
      %v442 = vpack.c.bf16 %v433, %v432
      %v443 = vpack.c.bf16 %v435, %v434
      %v444 = vld [vmem:[%s1] sm:$0xf]
      %v445 = vld [vmem:[%s1 + $0x4] sm:$0xf]
      %v446 = vld [vmem:[%s1 + $0x8] sm:$0xf]
      %v447 = vld [vmem:[%s1 + $0xc] sm:$0xf]
      %v448 = vld [vmem:[%s1 + $0x10] sm:$0xf]
      %v449 = vld [vmem:[%s1 + $0x14] sm:$0xf]
      %v450 = vld [vmem:[%s1 + $0x18] sm:$0xf]
      %v451 = vld [vmem:[%s1 + $0x1c] sm:$0xf]
      %v452 = vld [vmem:[%s4] sm:$0x1]
      %v454 = vlaneseq
      %v455 = vshrl.u32 %v454, 7
      %v456 = vsub.s32 0, %v455
      %v457 = vrot.slane %v452, %v456
      %v467 = vunpack.c.l.b16 %v444
      %v468 = vunpack.c.l.b16 %v445
      %v469 = vunpack.c.l.b16 %v446
      %v470 = vunpack.c.l.b16 %v447
      %v471 = vunpack.c.l.b16 %v448
      %v472 = vunpack.c.l.b16 %v449
      %v473 = vunpack.c.l.b16 %v450
      %v474 = vunpack.c.l.b16 %v451
      %v475 = vpack.c.b16 %v468, %v467
      %v476 = vpack.c.b16 %v470, %v469
      %v477 = vpack.c.b16 %v472, %v471
      %v478 = vpack.c.b16 %v474, %v473
      %vm483 = vcmask 523264
      %v485 = vsel %vm483, %v436, 0
      %v488 = vsel %vm483, %v437, 0
      %v491 = vsel %vm483, %v438, 0
      %v494 = vsel %vm483, %v439, 0
      %v497 = vsel %vm483, %v440, 0
      %v500 = vsel %vm483, %v441, 0
      %v503 = vsel %vm483, %v442, 0
      %v506 = vsel %vm483, %v443, 0
      %508 = vmatprep.subr.bf16.mxu0 0
      %509 = vmatpush1.bf16.msra.mxu0 %v475
      %510 = vmatprep.subr.bf16.mxu0 0
      %511 = vmatpush1.bf16.msra.mxu0 %v476
      %512 = vmatprep.subr.bf16.mxu0 0
      %513 = vmatpush1.bf16.msra.mxu0 %v477
      %514 = vmatprep.subr.bf16.mxu0 0
      %515 = vmatpush1.bf16.msra.mxu0 %v478
      %516 = vmatprep.subr.bf16.mxu0 0
      %517 = vmatpush1.bf16.msra.mxu0 0
      %518 = vmatprep.subr.bf16.mxu0 0
      %519 = vmatpush1.bf16.msra.mxu0 0
      %520 = vmatprep.subr.bf16.mxu0 0
      %521 = vmatpush1.bf16.msra.mxu0 0
      %522 = vmatprep.subr.bf16.mxu0 0
      %523 = vmatpush1.bf16.msra.mxu0 0
      %524 = vmatprep.subr.bf16.mxu0 0
      %525 = vmatpush1.bf16.msra.mxu0 0
      %526 = vmatprep.subr.bf16.mxu0 0
      %527 = vmatpush1.bf16.msra.mxu0 0
      %528 = vmatprep.subr.bf16.mxu0 0
      %529 = vmatpush1.bf16.msra.mxu0 0
      %530 = vmatprep.subr.bf16.mxu0 0
      %531 = vmatpush1.bf16.msra.mxu0 0
      %532 = vmatprep.subr.bf16.mxu0 0
      %533 = vmatpush1.bf16.msra.mxu0 0
      %534 = vmatprep.subr.bf16.mxu0 0
      %535 = vmatpush1.bf16.msra.mxu0 0
      %536 = vmatprep.subr.bf16.mxu0 0
      %537 = vmatpush1.bf16.msra.mxu0 0
      %538 = vmatprep.subr.bf16.mxu0 0
      %539 = vmatpush1.bf16.msra.mxu0 0
      %540 = vmatprep.mubr.bf16.mxu0 0
      %541 = vmatmul.mubr.bf16.gmra.mrb[0].mxu0 %v485
      %v542 = vpop.f32.mrb[0].mxu0
      %v543 = vadd.f32 %v457, %v542
      %v544 = vpop.f32.mrb[0].mxu0
      %v545 = vpop.f32.mrb[0].mxu0
      %v546 = vadd.f32 %v457, %v545
      %v547 = vpop.f32.mrb[0].mxu0
      %548 = vmatprep.mubr.bf16.mxu0 0
      %549 = vmatmul.mubr.bf16.gmra.mrb[0].mxu0 %v488
      %v550 = vpop.f32.mrb[0].mxu0
      %v551 = vadd.f32 %v457, %v550
      %v552 = vpop.f32.mrb[0].mxu0
      %v553 = vpop.f32.mrb[0].mxu0
      %v554 = vadd.f32 %v457, %v553
      %v555 = vpop.f32.mrb[0].mxu0
      %556 = vmatprep.mubr.bf16.mxu0 0
      %557 = vmatmul.mubr.bf16.gmra.mrb[0].mxu0 %v491
      %v558 = vpop.f32.mrb[0].mxu0
      %v559 = vadd.f32 %v457, %v558
      %v560 = vpop.f32.mrb[0].mxu0
      %v561 = vpop.f32.mrb[0].mxu0
      %v562 = vadd.f32 %v457, %v561
      %v563 = vpop.f32.mrb[0].mxu0
      %564 = vmatprep.mubr.bf16.mxu0 0
      %565 = vmatmul.mubr.bf16.gmra.mrb[0].mxu0 %v494
      %v566 = vpop.f32.mrb[0].mxu0
      %v567 = vadd.f32 %v457, %v566
      %v568 = vpop.f32.mrb[0].mxu0
      %v569 = vpop.f32.mrb[0].mxu0
      %v570 = vadd.f32 %v457, %v569
      %v571 = vpop.f32.mrb[0].mxu0
      %572 = vmatprep.mubr.bf16.mxu0 0
      %573 = vmatmul.mubr.bf16.gmra.mrb[0].mxu0 %v497
      %v574 = vpop.f32.mrb[0].mxu0
      %v575 = vadd.f32 %v457, %v574
      %v576 = vpop.f32.mrb[0].mxu0
      %v577 = vpop.f32.mrb[0].mxu0
      %v578 = vadd.f32 %v457, %v577
      %v579 = vpop.f32.mrb[0].mxu0
      %580 = vmatprep.mubr.bf16.mxu0 0
      %581 = vmatmul.mubr.bf16.gmra.mrb[0].mxu0 %v500
      %v582 = vpop.f32.mrb[0].mxu0
      %v583 = vadd.f32 %v457, %v582
      %v584 = vpop.f32.mrb[0].mxu0
      %v585 = vpop.f32.mrb[0].mxu0
      %v586 = vadd.f32 %v457, %v585
      %v587 = vpop.f32.mrb[0].mxu0
      %588 = vmatprep.mubr.bf16.mxu0 0
      %589 = vmatmul.mubr.bf16.gmra.mrb[0].mxu0 %v503
      %v590 = vpop.f32.mrb[0].mxu0
      %v591 = vadd.f32 %v457, %v590
      %v592 = vpop.f32.mrb[0].mxu0
      %v593 = vpop.f32.mrb[0].mxu0
      %v594 = vadd.f32 %v457, %v593
      %v595 = vpop.f32.mrb[0].mxu0
      %596 = vmatprep.mubr.bf16.mxu0 0
      %597 = vmatmul.mubr.bf16.gmra.mrb[0].mxu0 %v506
      %v598 = vpop.f32.mrb[0].mxu0
      %v599 = vadd.f32 %v457, %v598
      %v600 = vpop.f32.mrb[0].mxu0
      %v601 = vpop.f32.mrb[0].mxu0
      %v602 = vadd.f32 %v457, %v601
      %v603 = vpop.f32.mrb[0].mxu0
      %604 = vdwg.mxu0
      %v605 = vld [vmem:[%s2] sm:$0xf]
      %v606 = vld [vmem:[%s2 + $0x4] sm:$0xf]
      %v607 = vld [vmem:[%s2 + $0x8] sm:$0xf]
      %v608 = vld [vmem:[%s2 + $0xc] sm:$0xf]
      %v609 = vld [vmem:[%s2 + $0x10] sm:$0xf]
      %v610 = vld [vmem:[%s2 + $0x14] sm:$0xf]
      %v611 = vld [vmem:[%s2 + $0x18] sm:$0xf]
      %v612 = vld [vmem:[%s2 + $0x1c] sm:$0xf]
      %v613 = vld [vmem:[%s5] sm:$0x1]
      %v615 = vlaneseq
      %v616 = vshrl.u32 %v615, 7
      %v617 = vsub.s32 0, %v616
      %v618 = vrot.slane %v613, %v617
      %v628 = vunpack.c.l.b16 %v605
      %v629 = vunpack.c.l.b16 %v606
      %v630 = vunpack.c.l.b16 %v607
      %v631 = vunpack.c.l.b16 %v608
      %v632 = vunpack.c.l.b16 %v609
      %v633 = vunpack.c.l.b16 %v610
      %v634 = vunpack.c.l.b16 %v611
      %v635 = vunpack.c.l.b16 %v612
      %v636 = vpack.c.b16 %v629, %v628
      %v637 = vpack.c.b16 %v631, %v630
      %v638 = vpack.c.b16 %v633, %v632
      %v639 = vpack.c.b16 %v635, %v634
      %644 = vmatprep.subr.bf16.mxu0 0
      %645 = vmatpush1.bf16.msra.mxu0 %v636
      %646 = vmatprep.subr.bf16.mxu0 0
      %647 = vmatpush1.bf16.msra.mxu0 %v637
      %648 = vmatprep.subr.bf16.mxu0 0
      %649 = vmatpush1.bf16.msra.mxu0 %v638
      %650 = vmatprep.subr.bf16.mxu0 0
      %651 = vmatpush1.bf16.msra.mxu0 %v639
      %652 = vmatprep.subr.bf16.mxu0 0
      %653 = vmatpush1.bf16.msra.mxu0 0
      %654 = vmatprep.subr.bf16.mxu0 0
      %655 = vmatpush1.bf16.msra.mxu0 0
      %656 = vmatprep.subr.bf16.mxu0 0
      %657 = vmatpush1.bf16.msra.mxu0 0
      %658 = vmatprep.subr.bf16.mxu0 0
      %659 = vmatpush1.bf16.msra.mxu0 0
      %660 = vmatprep.subr.bf16.mxu0 0
      %661 = vmatpush1.bf16.msra.mxu0 0
      %662 = vmatprep.subr.bf16.mxu0 0
      %663 = vmatpush1.bf16.msra.mxu0 0
      %664 = vmatprep.subr.bf16.mxu0 0
      %665 = vmatpush1.bf16.msra.mxu0 0
      %666 = vmatprep.subr.bf16.mxu0 0
      %667 = vmatpush1.bf16.msra.mxu0 0
      %668 = vmatprep.subr.bf16.mxu0 0
      %669 = vmatpush1.bf16.msra.mxu0 0
      %670 = vmatprep.subr.bf16.mxu0 0
      %671 = vmatpush1.bf16.msra.mxu0 0
      %672 = vmatprep.subr.bf16.mxu0 0
      %673 = vmatpush1.bf16.msra.mxu0 0
      %674 = vmatprep.subr.bf16.mxu0 0
      %675 = vmatpush1.bf16.msra.mxu0 0
      %676 = vmatprep.mubr.bf16.mxu0 0
      %677 = vmatmul.mubr.bf16.gmra.mrb[0].mxu0 %v485
      %v678 = vpop.f32.mrb[0].mxu0
      %v679 = vadd.f32 %v618, %v678
      %v680 = vpop.f32.mrb[0].mxu0
      %v681 = vpop.f32.mrb[0].mxu0
      %v682 = vadd.f32 %v618, %v681
      %v683 = vpop.f32.mrb[0].mxu0
      %684 = vmatprep.mubr.bf16.mxu0 0
      %685 = vmatmul.mubr.bf16.gmra.mrb[0].mxu0 %v488
      %v686 = vpop.f32.mrb[0].mxu0
      %v687 = vadd.f32 %v618, %v686
      %v688 = vpop.f32.mrb[0].mxu0
      %v689 = vpop.f32.mrb[0].mxu0
      %v690 = vadd.f32 %v618, %v689
      %v691 = vpop.f32.mrb[0].mxu0
      %692 = vmatprep.mubr.bf16.mxu0 0
      %693 = vmatmul.mubr.bf16.gmra.mrb[0].mxu0 %v491
      %v694 = vpop.f32.mrb[0].mxu0
      %v695 = vadd.f32 %v618, %v694
      %v696 = vpop.f32.mrb[0].mxu0
      %v697 = vpop.f32.mrb[0].mxu0
      %v698 = vadd.f32 %v618, %v697
      %v699 = vpop.f32.mrb[0].mxu0
      %700 = vmatprep.mubr.bf16.mxu0 0
      %701 = vmatmul.mubr.bf16.gmra.mrb[0].mxu0 %v494
      %v702 = vpop.f32.mrb[0].mxu0
      %v703 = vadd.f32 %v618, %v702
      %v704 = vpop.f32.mrb[0].mxu0
      %v705 = vpop.f32.mrb[0].mxu0
      %v706 = vadd.f32 %v618, %v705
      %v707 = vpop.f32.mrb[0].mxu0
      %708 = vmatprep.mubr.bf16.mxu0 0
      %709 = vmatmul.mubr.bf16.gmra.mrb[0].mxu0 %v497
      %v710 = vpop.f32.mrb[0].mxu0
      %v711 = vadd.f32 %v618, %v710
      %v712 = vpop.f32.mrb[0].mxu0
      %v713 = vpop.f32.mrb[0].mxu0
      %v714 = vadd.f32 %v618, %v713
      %v715 = vpop.f32.mrb[0].mxu0
      %716 = vmatprep.mubr.bf16.mxu0 0
      %717 = vmatmul.mubr.bf16.gmra.mrb[0].mxu0 %v500
      %v718 = vpop.f32.mrb[0].mxu0
      %v719 = vadd.f32 %v618, %v718
      %v720 = vpop.f32.mrb[0].mxu0
      %v721 = vpop.f32.mrb[0].mxu0
      %v722 = vadd.f32 %v618, %v721
      %v723 = vpop.f32.mrb[0].mxu0
      %724 = vmatprep.mubr.bf16.mxu0 0
      %725 = vmatmul.mubr.bf16.gmra.mrb[0].mxu0 %v503
      %v726 = vpop.f32.mrb[0].mxu0
      %v727 = vadd.f32 %v618, %v726
      %v728 = vpop.f32.mrb[0].mxu0
      %v729 = vpop.f32.mrb[0].mxu0
      %v730 = vadd.f32 %v618, %v729
      %v731 = vpop.f32.mrb[0].mxu0
      %732 = vmatprep.mubr.bf16.mxu0 0
      %733 = vmatmul.mubr.bf16.gmra.mrb[0].mxu0 %v506
      %v734 = vpop.f32.mrb[0].mxu0
      %v735 = vadd.f32 %v618, %v734
      %v736 = vpop.f32.mrb[0].mxu0
      %v737 = vpop.f32.mrb[0].mxu0
      %v738 = vadd.f32 %v618, %v737
      %v739 = vpop.f32.mrb[0].mxu0
      %740 = vdwg.mxu0
      %v741 = vld [vmem:[%s3] sm:$0xf]
      %v742 = vld [vmem:[%s3 + $0x4] sm:$0xf]
      %v743 = vld [vmem:[%s3 + $0x8] sm:$0xf]
      %v744 = vld [vmem:[%s3 + $0xc] sm:$0xf]
      %v745 = vld [vmem:[%s3 + $0x10] sm:$0xf]
      %v746 = vld [vmem:[%s3 + $0x14] sm:$0xf]
      %v747 = vld [vmem:[%s3 + $0x18] sm:$0xf]
      %v748 = vld [vmem:[%s3 + $0x1c] sm:$0xf]
      %v749 = vld [vmem:[%s6] sm:$0x1]
      %v751 = vlaneseq
      %v752 = vshrl.u32 %v751, 7
      %v753 = vsub.s32 0, %v752
      %v754 = vrot.slane %v749, %v753
      %v764 = vunpack.c.l.b16 %v741
      %v765 = vunpack.c.l.b16 %v742
      %v766 = vunpack.c.l.b16 %v743
      %v767 = vunpack.c.l.b16 %v744
      %v768 = vunpack.c.l.b16 %v745
      %v769 = vunpack.c.l.b16 %v746
      %v770 = vunpack.c.l.b16 %v747
      %v771 = vunpack.c.l.b16 %v748
      %v772 = vpack.c.b16 %v765, %v764
      %v773 = vpack.c.b16 %v767, %v766
      %v774 = vpack.c.b16 %v769, %v768
      %v775 = vpack.c.b16 %v771, %v770
      %780 = vmatprep.subr.bf16.mxu0 0
      %781 = vmatpush1.bf16.msra.mxu0 %v772
      %782 = vmatprep.subr.bf16.mxu0 0
      %783 = vmatpush1.bf16.msra.mxu0 %v773
      %784 = vmatprep.subr.bf16.mxu0 0
      %785 = vmatpush1.bf16.msra.mxu0 %v774
      %786 = vmatprep.subr.bf16.mxu0 0
      %787 = vmatpush1.bf16.msra.mxu0 %v775
      %788 = vmatprep.subr.bf16.mxu0 0
      %789 = vmatpush1.bf16.msra.mxu0 0
      %790 = vmatprep.subr.bf16.mxu0 0
      %791 = vmatpush1.bf16.msra.mxu0 0
      %792 = vmatprep.subr.bf16.mxu0 0
      %793 = vmatpush1.bf16.msra.mxu0 0
      %794 = vmatprep.subr.bf16.mxu0 0
      %795 = vmatpush1.bf16.msra.mxu0 0
      %796 = vmatprep.subr.bf16.mxu0 0
      %797 = vmatpush1.bf16.msra.mxu0 0
      %798 = vmatprep.subr.bf16.mxu0 0
      %799 = vmatpush1.bf16.msra.mxu0 0
      %800 = vmatprep.subr.bf16.mxu0 0
      %801 = vmatpush1.bf16.msra.mxu0 0
      %802 = vmatprep.subr.bf16.mxu0 0
      %803 = vmatpush1.bf16.msra.mxu0 0
      %804 = vmatprep.subr.bf16.mxu0 0
      %805 = vmatpush1.bf16.msra.mxu0 0
      %806 = vmatprep.subr.bf16.mxu0 0
      %807 = vmatpush1.bf16.msra.mxu0 0
      %808 = vmatprep.subr.bf16.mxu0 0
      %809 = vmatpush1.bf16.msra.mxu0 0
      %810 = vmatprep.subr.bf16.mxu0 0
      %811 = vmatpush1.bf16.msra.mxu0 0
      %812 = vmatprep.mubr.bf16.mxu0 0
      %813 = vmatmul.mubr.bf16.gmra.mrb[0].mxu0 %v485
      %v814 = vpop.f32.mrb[0].mxu0
      %v815 = vadd.f32 %v754, %v814
      %v816 = vpop.f32.mrb[0].mxu0
      %v817 = vpop.f32.mrb[0].mxu0
      %v818 = vadd.f32 %v754, %v817
      %v819 = vpop.f32.mrb[0].mxu0
      %820 = vmatprep.mubr.bf16.mxu0 0
      %821 = vmatmul.mubr.bf16.gmra.mrb[0].mxu0 %v488
      %v822 = vpop.f32.mrb[0].mxu0
      %v823 = vadd.f32 %v754, %v822
      %v824 = vpop.f32.mrb[0].mxu0
      %v825 = vpop.f32.mrb[0].mxu0
      %v826 = vadd.f32 %v754, %v825
      %v827 = vpop.f32.mrb[0].mxu0
      %828 = vmatprep.mubr.bf16.mxu0 0
      %829 = vmatmul.mubr.bf16.gmra.mrb[0].mxu0 %v491
      %v830 = vpop.f32.mrb[0].mxu0
      %v831 = vadd.f32 %v754, %v830
      %v832 = vpop.f32.mrb[0].mxu0
      %v833 = vpop.f32.mrb[0].mxu0
      %v834 = vadd.f32 %v754, %v833
      %v835 = vpop.f32.mrb[0].mxu0
      %836 = vmatprep.mubr.bf16.mxu0 0
      %837 = vmatmul.mubr.bf16.gmra.mrb[0].mxu0 %v494
      %v838 = vpop.f32.mrb[0].mxu0
      %v839 = vadd.f32 %v754, %v838
      %v840 = vpop.f32.mrb[0].mxu0
      %v841 = vpop.f32.mrb[0].mxu0
      %v842 = vadd.f32 %v754, %v841
      %v843 = vpop.f32.mrb[0].mxu0
      %844 = vmatprep.mubr.bf16.mxu0 0
      %845 = vmatmul.mubr.bf16.gmra.mrb[0].mxu0 %v497
      %v846 = vpop.f32.mrb[0].mxu0
      %v847 = vadd.f32 %v754, %v846
      %v848 = vpop.f32.mrb[0].mxu0
      %v849 = vpop.f32.mrb[0].mxu0
      %v850 = vadd.f32 %v754, %v849
      %v851 = vpop.f32.mrb[0].mxu0
      %852 = vmatprep.mubr.bf16.mxu0 0
      %853 = vmatmul.mubr.bf16.gmra.mrb[0].mxu0 %v500
      %v854 = vpop.f32.mrb[0].mxu0
      %v855 = vadd.f32 %v754, %v854
      %v856 = vpop.f32.mrb[0].mxu0
      %v857 = vpop.f32.mrb[0].mxu0
      %v858 = vadd.f32 %v754, %v857
      %v859 = vpop.f32.mrb[0].mxu0
      %860 = vmatprep.mubr.bf16.mxu0 0
      %861 = vmatmul.mubr.bf16.gmra.mrb[0].mxu0 %v503
      %v862 = vpop.f32.mrb[0].mxu0
      %v863 = vadd.f32 %v754, %v862
      %v864 = vpop.f32.mrb[0].mxu0
      %v865 = vpop.f32.mrb[0].mxu0
      %v866 = vadd.f32 %v754, %v865
      %v867 = vpop.f32.mrb[0].mxu0
      %868 = vmatprep.mubr.bf16.mxu0 0
      %869 = vmatmul.mubr.bf16.gmra.mrb[0].mxu0 %v506
      %v870 = vpop.f32.mrb[0].mxu0
      %v871 = vadd.f32 %v754, %v870
      %v872 = vpop.f32.mrb[0].mxu0
      %v873 = vpop.f32.mrb[0].mxu0
      %v874 = vadd.f32 %v754, %v873
      %v875 = vpop.f32.mrb[0].mxu0
      %876 = vdwg.mxu0
      %v877 = vpack.c.bf16 %v546, %v543
      %v878 = vpack.c.bf16 %v554, %v551
      %v879 = vpack.c.bf16 %v562, %v559
      %v880 = vpack.c.bf16 %v570, %v567
      %v881 = vpack.c.bf16 %v578, %v575
      %v882 = vpack.c.bf16 %v586, %v583
      %v883 = vpack.c.bf16 %v594, %v591
      %v884 = vpack.c.bf16 %v602, %v599
      %v893 = vunpack.c.l.b16 %v877
      %v894 = vunpack.c.h.b16 %v877
      %v895 = vunpack.c.l.b16 %v878
      %v896 = vunpack.c.h.b16 %v878
      %v897 = vunpack.c.l.b16 %v879
      %v898 = vunpack.c.h.b16 %v879
      %v899 = vunpack.c.l.b16 %v880
      %v900 = vunpack.c.h.b16 %v880
      %v901 = vunpack.c.l.b16 %v881
      %v902 = vunpack.c.h.b16 %v881
      %v903 = vunpack.c.l.b16 %v882
      %v904 = vunpack.c.h.b16 %v882
      %v905 = vunpack.c.l.b16 %v883
      %v906 = vunpack.c.h.b16 %v883
      %v907 = vunpack.c.l.b16 %v884
      %v908 = vunpack.c.h.b16 %v884
      %v909 = vpack.c.b16 %v893, %v893
      %v910 = vpack.c.b16 %v894, %v894
      %v911 = vpack.c.b16 %v895, %v895
      %v912 = vpack.c.b16 %v896, %v896
      %v913 = vpack.c.b16 %v897, %v897
      %v914 = vpack.c.b16 %v898, %v898
      %v915 = vpack.c.b16 %v899, %v899
      %v916 = vpack.c.b16 %v900, %v900
      %v917 = vpack.c.b16 %v901, %v901
      %v918 = vpack.c.b16 %v902, %v902
      %v919 = vpack.c.b16 %v903, %v903
      %v920 = vpack.c.b16 %v904, %v904
      %v921 = vpack.c.b16 %v905, %v905
      %v922 = vpack.c.b16 %v906, %v906
      %v923 = vpack.c.b16 %v907, %v907
      %v924 = vpack.c.b16 %v908, %v908
      %vm941 = vcmask 519168
      %942 = vst.msk [vmem:[%s397] sm:$0xf] %vm941, %v909
      %943 = vst.msk [vmem:[%s397 + $0x4] sm:$0xf] %vm941, %v910
      %944 = vst.msk [vmem:[%s397 + $0x8] sm:$0xf] %vm941, %v911
      %945 = vst.msk [vmem:[%s397 + $0xc] sm:$0xf] %vm941, %v912
      %946 = vst.msk [vmem:[%s397 + $0x10] sm:$0xf] %vm941, %v913
      %947 = vst.msk [vmem:[%s397 + $0x14] sm:$0xf] %vm941, %v914
      %948 = vst.msk [vmem:[%s397 + $0x18] sm:$0xf] %vm941, %v915
      %949 = vst.msk [vmem:[%s397 + $0x1c] sm:$0xf] %vm941, %v916
      %950 = vst.msk [vmem:[%s397 + $0x20] sm:$0xf] %vm941, %v917
      %951 = vst.msk [vmem:[%s397 + $0x24] sm:$0xf] %vm941, %v918
      %952 = vst.msk [vmem:[%s397 + $0x28] sm:$0xf] %vm941, %v919
      %953 = vst.msk [vmem:[%s397 + $0x2c] sm:$0xf] %vm941, %v920
      %954 = vst.msk [vmem:[%s397 + $0x30] sm:$0xf] %vm941, %v921
      %955 = vst.msk [vmem:[%s397 + $0x34] sm:$0xf] %vm941, %v922
      %956 = vst.msk [vmem:[%s397 + $0x38] sm:$0xf] %vm941, %v923
      %957 = vst.msk [vmem:[%s397 + $0x3c] sm:$0xf] %vm941, %v924
      %v958 = vpack.c.bf16 %v682, %v679
      %v959 = vpack.c.bf16 %v690, %v687
      %v960 = vpack.c.bf16 %v698, %v695
      %v961 = vpack.c.bf16 %v706, %v703
      %v962 = vpack.c.bf16 %v714, %v711
      %v963 = vpack.c.bf16 %v722, %v719
      %v964 = vpack.c.bf16 %v730, %v727
      %v965 = vpack.c.bf16 %v738, %v735
      %v974 = vunpack.c.l.b16 %v958
      %v975 = vunpack.c.h.b16 %v958
      %v976 = vunpack.c.l.b16 %v959
      %v977 = vunpack.c.h.b16 %v959
      %v978 = vunpack.c.l.b16 %v960
      %v979 = vunpack.c.h.b16 %v960
      %v980 = vunpack.c.l.b16 %v961
      %v981 = vunpack.c.h.b16 %v961
      %v982 = vunpack.c.l.b16 %v962
      %v983 = vunpack.c.h.b16 %v962
      %v984 = vunpack.c.l.b16 %v963
      %v985 = vunpack.c.h.b16 %v963
      %v986 = vunpack.c.l.b16 %v964
      %v987 = vunpack.c.h.b16 %v964
      %v988 = vunpack.c.l.b16 %v965
      %v989 = vunpack.c.h.b16 %v965
      %v990 = vpack.c.b16 %v974, %v974
      %v991 = vpack.c.b16 %v975, %v975
      %v992 = vpack.c.b16 %v976, %v976
      %v993 = vpack.c.b16 %v977, %v977
      %v994 = vpack.c.b16 %v978, %v978
      %v995 = vpack.c.b16 %v979, %v979
      %v996 = vpack.c.b16 %v980, %v980
      %v997 = vpack.c.b16 %v981, %v981
      %v998 = vpack.c.b16 %v982, %v982
      %v999 = vpack.c.b16 %v983, %v983
      %v1000 = vpack.c.b16 %v984, %v984
      %v1001 = vpack.c.b16 %v985, %v985
      %v1002 = vpack.c.b16 %v986, %v986
      %v1003 = vpack.c.b16 %v987, %v987
      %v1004 = vpack.c.b16 %v988, %v988
      %v1005 = vpack.c.b16 %v989, %v989
      %1022 = vst.msk [vmem:[%s407] sm:$0xf] %vm941, %v990
      %1023 = vst.msk [vmem:[%s407 + $0x4] sm:$0xf] %vm941, %v991
      %1024 = vst.msk [vmem:[%s407 + $0x8] sm:$0xf] %vm941, %v992
      %1025 = vst.msk [vmem:[%s407 + $0xc] sm:$0xf] %vm941, %v993
      %1026 = vst.msk [vmem:[%s407 + $0x10] sm:$0xf] %vm941, %v994
      %1027 = vst.msk [vmem:[%s407 + $0x14] sm:$0xf] %vm941, %v995
      %1028 = vst.msk [vmem:[%s407 + $0x18] sm:$0xf] %vm941, %v996
      %1029 = vst.msk [vmem:[%s407 + $0x1c] sm:$0xf] %vm941, %v997
      %1030 = vst.msk [vmem:[%s407 + $0x20] sm:$0xf] %vm941, %v998
      %1031 = vst.msk [vmem:[%s407 + $0x24] sm:$0xf] %vm941, %v999
      %1032 = vst.msk [vmem:[%s407 + $0x28] sm:$0xf] %vm941, %v1000
      %1033 = vst.msk [vmem:[%s407 + $0x2c] sm:$0xf] %vm941, %v1001
      %1034 = vst.msk [vmem:[%s407 + $0x30] sm:$0xf] %vm941, %v1002
      %1035 = vst.msk [vmem:[%s407 + $0x34] sm:$0xf] %vm941, %v1003
      %1036 = vst.msk [vmem:[%s407 + $0x38] sm:$0xf] %vm941, %v1004
      %1037 = vst.msk [vmem:[%s407 + $0x3c] sm:$0xf] %vm941, %v1005
      %v1038 = vpack.c.bf16 %v818, %v815
      %v1039 = vpack.c.bf16 %v826, %v823
      %v1040 = vpack.c.bf16 %v834, %v831
      %v1041 = vpack.c.bf16 %v842, %v839
      %v1042 = vpack.c.bf16 %v850, %v847
      %v1043 = vpack.c.bf16 %v858, %v855
      %v1044 = vpack.c.bf16 %v866, %v863
      %v1045 = vpack.c.bf16 %v874, %v871
      %v1054 = vunpack.c.l.b16 %v1038
      %v1055 = vunpack.c.h.b16 %v1038
      %v1056 = vunpack.c.l.b16 %v1039
      %v1057 = vunpack.c.h.b16 %v1039
      %v1058 = vunpack.c.l.b16 %v1040
      %v1059 = vunpack.c.h.b16 %v1040
      %v1060 = vunpack.c.l.b16 %v1041
      %v1061 = vunpack.c.h.b16 %v1041
      %v1062 = vunpack.c.l.b16 %v1042
      %v1063 = vunpack.c.h.b16 %v1042
      %v1064 = vunpack.c.l.b16 %v1043
      %v1065 = vunpack.c.h.b16 %v1043
      %v1066 = vunpack.c.l.b16 %v1044
      %v1067 = vunpack.c.h.b16 %v1044
      %v1068 = vunpack.c.l.b16 %v1045
      %v1069 = vunpack.c.h.b16 %v1045
      %v1070 = vpack.c.b16 %v1054, %v1054
      %v1071 = vpack.c.b16 %v1055, %v1055
      %v1072 = vpack.c.b16 %v1056, %v1056
      %v1073 = vpack.c.b16 %v1057, %v1057
      %v1074 = vpack.c.b16 %v1058, %v1058
      %v1075 = vpack.c.b16 %v1059, %v1059
      %v1076 = vpack.c.b16 %v1060, %v1060
      %v1077 = vpack.c.b16 %v1061, %v1061
      %v1078 = vpack.c.b16 %v1062, %v1062
      %v1079 = vpack.c.b16 %v1063, %v1063
      %v1080 = vpack.c.b16 %v1064, %v1064
      %v1081 = vpack.c.b16 %v1065, %v1065
      %v1082 = vpack.c.b16 %v1066, %v1066
      %v1083 = vpack.c.b16 %v1067, %v1067
      %v1084 = vpack.c.b16 %v1068, %v1068
      %v1085 = vpack.c.b16 %v1069, %v1069
      %1102 = vst.msk [vmem:[%s417] sm:$0xf] %vm941, %v1070
      %1103 = vst.msk [vmem:[%s417 + $0x4] sm:$0xf] %vm941, %v1071
      %1104 = vst.msk [vmem:[%s417 + $0x8] sm:$0xf] %vm941, %v1072
      %1105 = vst.msk [vmem:[%s417 + $0xc] sm:$0xf] %vm941, %v1073
      %1106 = vst.msk [vmem:[%s417 + $0x10] sm:$0xf] %vm941, %v1074
      %1107 = vst.msk [vmem:[%s417 + $0x14] sm:$0xf] %vm941, %v1075
      %1108 = vst.msk [vmem:[%s417 + $0x18] sm:$0xf] %vm941, %v1076
      %1109 = vst.msk [vmem:[%s417 + $0x1c] sm:$0xf] %vm941, %v1077
      %1110 = vst.msk [vmem:[%s417 + $0x20] sm:$0xf] %vm941, %v1078
      %1111 = vst.msk [vmem:[%s417 + $0x24] sm:$0xf] %vm941, %v1079
      %1112 = vst.msk [vmem:[%s417 + $0x28] sm:$0xf] %vm941, %v1080
      %1113 = vst.msk [vmem:[%s417 + $0x2c] sm:$0xf] %vm941, %v1081
      %1114 = vst.msk [vmem:[%s417 + $0x30] sm:$0xf] %vm941, %v1082
      %1115 = vst.msk [vmem:[%s417 + $0x34] sm:$0xf] %vm941, %v1083
      %1116 = vst.msk [vmem:[%s417 + $0x38] sm:$0xf] %vm941, %v1084
      %1117 = vst.msk [vmem:[%s417 + $0x3c] sm:$0xf] %vm941, %v1085
      %s1118 = smul.u32 16, %s26
      %p1119 = scmp.lt.s32.totalorder %s25, 1
      %s1120 = scalar_select %p1119, %s25, 1
      %p1121 = scmp.lt.s32.totalorder %s1118, 31
      %s1122 = scalar_select %p1121, %s1118, 31
      %s1123 = smul.addr %s1120, 32
      %s1124 = sadd.s32 %s1122, %s1123
      %s1125 = smul.addr %s1124, 4
      %s1126 = scalar_lea.vmem %s7, %s1125
      %s1127 = smul.u32 16, %s26
      %p1128 = scmp.lt.s32.totalorder %s25, 1
      %s1129 = scalar_select %p1128, %s25, 1
      %p1130 = scmp.lt.s32.totalorder %s1127, 31
      %s1131 = scalar_select %p1130, %s1127, 31
      %s1132 = smul.addr %s1129, 32
      %s1133 = sadd.s32 %s1131, %s1132
      %s1134 = smul.addr %s1133, 4
      %s1135 = scalar_lea.vmem %s8, %s1134
      %s1136 = smul.u32 16, %s26
      %p1137 = scmp.lt.s32.totalorder %s25, 1
      %s1138 = scalar_select %p1137, %s25, 1
      %p1139 = scmp.lt.s32.totalorder %s1136, 31
      %s1140 = scalar_select %p1139, %s1136, 31
      %s1141 = smul.addr %s1138, 32
      %s1142 = sadd.s32 %s1140, %s1141
      %s1143 = smul.addr %s1142, 4
      %s1144 = scalar_lea.vmem %s9, %s1143
      // Predicated region
      $region49: #{tpu_custom_call.1} parent=47 // pred_check
        %p1145 = pneg %p207
      $region50: #{tpu_custom_call.1} parent=47 // pred_check_branch
        %1147 = sbr.rel (%p1145) target = $region52
      $region51: #{tpu_custom_call.1} parent=47 // pred_region
        %s1148 = smul.u32 16, %s26
      $region52: #{tpu_custom_call.1} parent=47 // pred_fallthru
        _
      // Predicated region
      $region53: #{tpu_custom_call.1} parent=47 // pred_check
        %p1149 = pneg %p235
      $region54: #{tpu_custom_call.1} parent=47 // pred_check_branch
        %1151 = sbr.rel (%p1149) target = $region56
      $region55: #{tpu_custom_call.1} parent=47 // pred_region
        %s1152 = smul.u32 16, %s26
      $region56: #{tpu_custom_call.1} parent=47 // pred_fallthru
        _
      // Predicated region
      $region57: #{tpu_custom_call.1} parent=47 // pred_check
        %p1153 = pneg %p263
      $region58: #{tpu_custom_call.1} parent=47 // pred_check_branch
        %1155 = sbr.rel (%p1153) target = $region60
      $region59: #{tpu_custom_call.1} parent=47 // pred_region
        %s1156 = smul.u32 16, %s26
      $region60: #{tpu_custom_call.1} parent=47 // pred_fallthru
        _
    $region48: #{tpu_custom_call.1} parent=5 // pred_fallthru
      _
    %p1157 = scmp.le.s32.totalorder 2, %s16
    // Predicated region
    $region61: #{tpu_custom_call.1} parent=5 // pred_check
      %p1158 = pneg %p1157
    $region62: #{tpu_custom_call.1} parent=5 // pred_check_branch
      %1160 = sbr.rel (%p1158) target = $region64
    $region63: #{tpu_custom_call.1} parent=5 // pred_region
      %s1161 = ssub.s32 %s16, 2
      // Predicated region
      $region65: #{tpu_custom_call.1} parent=63 // pred_check
        %p1162 = pneg %p213
      $region66: #{tpu_custom_call.1} parent=63 // pred_check_branch
        %1164 = sbr.rel (%p1162) target = $region68
      $region67: #{tpu_custom_call.1} parent=63 // pred_region
        %s1165 = smul.u32 16, %s28
        %p1166 = scmp.lt.s32.totalorder %s27, 1
        %s1167 = scalar_select %p1166, %s27, 1
        %p1168 = scmp.lt.s32.totalorder %s1165, 31
        %s1169 = scalar_select %p1168, %s1165, 31
        %s1170 = smul.addr %s1167, 32
        %s1171 = sadd.s32 %s1169, %s1170
        %s1172 = smul.addr %s1171, 4
        %s1173 = scalar_lea.vmem %s7, %s1172
      $region68: #{tpu_custom_call.1} parent=63 // pred_fallthru
        _
      // Predicated region
      $region69: #{tpu_custom_call.1} parent=63 // pred_check
        %p1174 = pneg %p241
      $region70: #{tpu_custom_call.1} parent=63 // pred_check_branch
        %1176 = sbr.rel (%p1174) target = $region72
      $region71: #{tpu_custom_call.1} parent=63 // pred_region
        %s1177 = smul.u32 16, %s28
        %p1178 = scmp.lt.s32.totalorder %s27, 1
        %s1179 = scalar_select %p1178, %s27, 1
        %p1180 = scmp.lt.s32.totalorder %s1177, 31
        %s1181 = scalar_select %p1180, %s1177, 31
        %s1182 = smul.addr %s1179, 32
        %s1183 = sadd.s32 %s1181, %s1182
        %s1184 = smul.addr %s1183, 4
        %s1185 = scalar_lea.vmem %s8, %s1184
      $region72: #{tpu_custom_call.1} parent=63 // pred_fallthru
        _
      // Predicated region
      $region73: #{tpu_custom_call.1} parent=63 // pred_check
        %p1186 = pneg %p269
      $region74: #{tpu_custom_call.1} parent=63 // pred_check_branch
        %1188 = sbr.rel (%p1186) target = $region76
      $region75: #{tpu_custom_call.1} parent=63 // pred_region
        %s1189 = smul.u32 16, %s28
        %p1190 = scmp.lt.s32.totalorder %s27, 1
        %s1191 = scalar_select %p1190, %s27, 1
        %p1192 = scmp.lt.s32.totalorder %s1189, 31
        %s1193 = scalar_select %p1192, %s1189, 31
        %s1194 = smul.addr %s1191, 32
        %s1195 = sadd.s32 %s1193, %s1194
        %s1196 = smul.addr %s1195, 4
        %s1197 = scalar_lea.vmem %s9, %s1196
      $region76: #{tpu_custom_call.1} parent=63 // pred_fallthru
        _
    $region64: #{tpu_custom_call.1} parent=5 // pred_fallthru
      _
  $region6: #{tpu_custom_call.1} parent=0 // loop_footer
    %s20 = sadd.s32 1, %s16
  $region7: #{tpu_custom_call.1} parent=0 // loop_footer_branch
    %15 = sbr.rel target = $region3
  $region8: #{tpu_custom_call.1} parent=0 // loop_exit
    _

</llo_original>
